<compile_context>
chip_gen: v7x
topology: tpu7x:2x2x1
jax: 0.10.0
libtpu: 0.0.40
codegen_flags: <defaults>
</compile_context>

<pallas_src>
from functools import partial

import jax
import jax.numpy as jnp
from jax.experimental import pallas as pl
from jax.experimental.pallas import tpu as pltpu


def _round_up(n, m):
    return ((n + m - 1) // m) * m


# ---------------------------------------------------------------------------
# Kernel: conv1 on the VPU, then 3 bf16 MXU matmuls (bias + ReLU fused).
# n_split (static) splits the batch tile into independent sub-chains so the
# scheduler can fill MXU bubbles between the dependent matmuls.
# ---------------------------------------------------------------------------
def iris_cnn_kernel(x_ref, w1_ref, b1_ref, w2_ref, b2_ref,
                    wf1_ref, bf1_ref, wf2_ref, bf2_ref, out_ref, *, n_split):
    TB = x_ref.shape[0]
    sub = TB // n_split

    w1 = w1_ref[...]     # (4, 192)  f32  (block-Toeplitz conv1 weight)
    b1 = b1_ref[...]     # (1, 192)  f32
    w2 = w2_ref[...]     # (192, 256) bf16
    b2 = b2_ref[...]     # (1, 256)  f32
    wf1 = wf1_ref[...]   # (256, 64)  bf16
    bf1 = bf1_ref[...]   # (1, 64)   f32
    wf2 = wf2_ref[...]   # (64, 128)  bf16 (padded to 128 output lanes)
    bf2 = bf2_ref[...]   # (1, 128)  f32

    for s in range(n_split):
        rows = slice(s * sub, (s + 1) * sub)         # static sublane slice
        x = x_ref[rows, :]                           # (sub, 4) f32

        # conv1 + ReLU on the VPU: K=4 contraction as 4 broadcast FMAs.
        h1 = b1
        for k in range(4):
            h1 = h1 + x[:, k:k + 1] * w1[k:k + 1, :]
        h1 = jnp.maximum(h1, 0.0)                    # (sub, 192) f32

        # conv2 + ReLU: bf16 MXU matmul, f32 accumulation.
        h2 = jnp.maximum(
            jnp.dot(h1.astype(jnp.bfloat16), w2,
                    preferred_element_type=jnp.float32) + b2, 0.0)   # (sub,256)

        # fc1 + ReLU.
        h3 = jnp.maximum(
            jnp.dot(h2.astype(jnp.bfloat16), wf1,
                    preferred_element_type=jnp.float32) + bf1, 0.0)  # (sub,64)

        # fc2 (lane-dense padded output; real logits in cols 0:3).
        out_ref[rows, :] = (jnp.dot(h3.astype(jnp.bfloat16), wf2,
                                    preferred_element_type=jnp.float32)
                            + bf2)                                   # (sub,128)


# ---------------------------------------------------------------------------
# One-time weight fusion (pure layout work, done outside the per-call path).
# PyTorch layouts: W1 (64,1,2), b1 (64,), W2 (128,64,2), b2 (128,),
#                  Wf1 (64,256), bf1 (64,), Wf2 (3,64), bf2 (3,).
# ---------------------------------------------------------------------------
def fuse_iris_params(W1, b1, W2, b2, Wf1, bf1, Wf2, bf2):
    f32, bf16 = jnp.float32, jnp.bfloat16

    # conv1 -> block-Toeplitz (4, 192), kept f32 (consumed by the VPU path).
    w1k = W1[:, 0, :].T.astype(f32)                       # (2, 64)  [tap, out]
    W1f = jnp.zeros((4, 192), f32)
    for t in range(3):
        W1f = W1f.at[t, 64 * t:64 * (t + 1)].set(w1k[0])
        W1f = W1f.at[t + 1, 64 * t:64 * (t + 1)].set(w1k[1])
    b1f = jnp.tile(b1.astype(f32), 3).reshape(1, 192)

    # conv2 -> block matrix (192, 256), bf16 for the MXU fast path.
    w2a = W2[:, :, 0].T.astype(f32)                       # (64, 128) tap k=0
    w2b = W2[:, :, 1].T.astype(f32)                       # (64, 128) tap k=1
    z = jnp.zeros((64, 128), f32)
    W2f = jnp.concatenate([
        jnp.concatenate([w2a, z], axis=1),
        jnp.concatenate([w2b, w2a], axis=1),
        jnp.concatenate([z, w2b], axis=1),
    ], axis=0).astype(bf16)                               # (192, 256)
    b2f = jnp.tile(b2.astype(f32), 2).reshape(1, 256)

    # fc1 -> (256, 64): even/odd column split matches PyTorch's (c,t) flatten.
    Wf1f = jnp.concatenate([Wf1[:, 0::2].T, Wf1[:, 1::2].T],
                           axis=0).astype(bf16)           # (256, 64)
    bf1f = bf1.astype(f32).reshape(1, 64)

    # fc2 -> zero-padded to 128 output lanes for an unmasked store.
    Wf2p = jnp.zeros((64, 128), f32).at[:, :3].set(Wf2.T.astype(f32)).astype(bf16)
    bf2p = jnp.zeros((1, 128), f32).at[:, :3].set(bf2.astype(f32))

    return (W1f, b1f, W2f, b2f, Wf1f, bf1f, Wf2p, bf2p)


# ---------------------------------------------------------------------------
# Forward: batch-gridded pallas_call; weights VMEM-resident across grid steps.
# ---------------------------------------------------------------------------
@partial(jax.jit, static_argnames=("block_b",))
def iris_cnn_forward(x, fused, block_b=2048):
    W1f, b1f, W2f, b2f, Wf1f, bf1f, Wf2p, bf2p = fused
    B = x.shape[0]

    # Batch tile: multiple of 8 (sublane rule), capped at block_b, and sized so
    # large batches get >=4 grid steps (pipelining + v7x 2-TensorCore sharding).
    block_b = max(8, _round_up(block_b, 8))
    TB = max(8, min(block_b, _round_up(pl.cdiv(B, 4), 8)))
    Bp = _round_up(B, TB)

    xf = x.astype(jnp.float32)
    xp = xf if Bp == B else jnp.zeros((Bp, 4), jnp.float32).at[:B].set(xf)

    grid = (Bp // TB,)
    n_split = 2 if (TB % 16 == 0 and TB >= 16) else 1

    def const_spec(shape):
        # Full-array block, constant index -> stays resident across grid steps.
        return pl.BlockSpec(shape, lambda i: (0, 0))

    out = pl.pallas_call(
        partial(iris_cnn_kernel, n_split=n_split),
        out_shape=jax.ShapeDtypeStruct((Bp, 128), jnp.float32),
        grid=grid,
        in_specs=[
            pl.BlockSpec((TB, 4), lambda i: (i, 0)),       # x tile (pipelined)
            const_spec((4, 192)), const_spec((1, 192)),    # conv1 (VPU path)
            const_spec((192, 256)), const_spec((1, 256)),  # conv2
            const_spec((256, 64)), const_spec((1, 64)),    # fc1
            const_spec((64, 128)), const_spec((1, 128)),   # fc2 (padded)
        ],
        out_specs=pl.BlockSpec((TB, 128), lambda i: (i, 0)),
        compiler_params=pltpu.CompilerParams(
            dimension_semantics=("parallel",)),
    )(xp, W1f, b1f, W2f, b2f, Wf1f, bf1f, Wf2p, bf2p)

    return out[:B, :3]


# ---------------------------------------------------------------------------
# Pure-JAX reference (direct transcription of the PyTorch forward, NCW).
# ---------------------------------------------------------------------------
def reference_forward(x, W1, b1, W2, b2, Wf1, bf1, Wf2, bf2):
    B = x.shape[0]
    xp = jnp.stack([x[:, t:t + 2] for t in range(3)], axis=1)           # (B,3,2)
    h1 = jax.nn.relu(jnp.einsum('btk,ok->bot', xp, W1[:, 0, :])
                     + b1[None, :, None])                               # (B,64,3)
    p2 = jnp.stack([h1[:, :, t:t + 2] for t in range(2)], axis=1)       # (B,2,64,2)
    h2 = jax.nn.relu(jnp.einsum('btck,ock->bot', p2, W2)
                     + b2[None, :, None])                               # (B,128,2)
    flat = h2.reshape(B, -1)                                            # (B,256)
    h3 = jax.nn.relu(flat @ Wf1.T + bf1)
    return h3 @ Wf2.T + bf2


if __name__ == "__main__":
    key = jax.random.PRNGKey(0)
    kx, k1, k2, k3, k4, k5, k6, k7, k8, kx2 = jax.random.split(key, 10)

    B = 8                                        # small batch of iris samples
    x = jax.random.normal(kx, (B, 4), dtype=jnp.float32)

    # deterministic synthetic parameters (PyTorch-layout shapes)
    W1 = 0.1 * jax.random.normal(k1, (64, 1, 2), dtype=jnp.float32)
    b1 = 0.1 * jax.random.normal(k2, (64,), dtype=jnp.float32)
    W2 = 0.1 * jax.random.normal(k3, (128, 64, 2), dtype=jnp.float32)
    b2 = 0.1 * jax.random.normal(k4, (128,), dtype=jnp.float32)
    Wf1 = 0.1 * jax.random.normal(k5, (64, 256), dtype=jnp.float32)
    bf1 = 0.1 * jax.random.normal(k6, (64,), dtype=jnp.float32)
    Wf2 = 0.1 * jax.random.normal(k7, (3, 64), dtype=jnp.float32)
    bf2 = 0.1 * jax.random.normal(k8, (3,), dtype=jnp.float32)

    # Fuse / reorder the weights ONCE, outside the per-call path.
    fused = jax.tree_util.tree_map(jax.block_until_ready,
                                   fuse_iris_params(W1, b1, W2, b2,
                                                    Wf1, bf1, Wf2, bf2))

    # Small-batch check (single grid step).
    out = jax.block_until_ready(iris_cnn_forward(x, fused))
    ref = reference_forward(x, W1, b1, W2, b2, Wf1, bf1, Wf2, bf2)
    assert out.shape == (B, 3)
    # bf16 MXU path -> loosened tolerance (argmax/classification unaffected).
    assert jnp.allclose(out, ref, atol=5e-2, rtol=5e-2), "mismatch vs reference"

    # Larger-batch check exercising the grid, batch padding and half-tile split.
    B2 = 250
    x2 = jax.random.normal(kx2, (B2, 4), dtype=jnp.float32)
    out2 = jax.block_until_ready(iris_cnn_forward(x2, fused, block_b=64))
    ref2 = reference_forward(x2, W1, b1, W2, b2, Wf1, bf1, Wf2, bf2)
    assert out2.shape == (B2, 3)
    assert jnp.allclose(out2, ref2, atol=5e-2, rtol=5e-2), "mismatch vs reference"

    print("KERNEL_OK")
</pallas_src>

<mosaic_0001>
module attributes {stable_mosaic.version = 11 : i64} {
  func.func @iris_cnn_kernel(%arg0: i32, %arg1: memref<8x4xf32, #tpu.memory_space<vmem>>, %arg2: memref<4x192xf32, #tpu.memory_space<vmem>>, %arg3: memref<1x192xf32, #tpu.memory_space<vmem>>, %arg4: memref<192x256xbf16, #tpu.memory_space<vmem>>, %arg5: memref<1x256xf32, #tpu.memory_space<vmem>>, %arg6: memref<256x64xbf16, #tpu.memory_space<vmem>>, %arg7: memref<1x64xf32, #tpu.memory_space<vmem>>, %arg8: memref<64x128xbf16, #tpu.memory_space<vmem>>, %arg9: memref<1x128xf32, #tpu.memory_space<vmem>>, %arg10: memref<8x128xf32, #tpu.memory_space<vmem>>) attributes {dimension_semantics = [#tpu.dimension_semantics<parallel>], iteration_bounds = array<i64: 1>, scalar_prefetch = 0 : i64, scratch_operands = 0 : i64, tpu.core_type = #tpu.core_type<tc>, window_params = [{transform_indices = @transform_0, window_bounds = array<i64: 8, 4>}, {pipeline_mode = #tpu.pipeline_mode<synchronous>, transform_indices = @transform_1, window_bounds = array<i64: 4, 192>}, {pipeline_mode = #tpu.pipeline_mode<synchronous>, transform_indices = @transform_2, window_bounds = array<i64: 1, 192>}, {pipeline_mode = #tpu.pipeline_mode<synchronous>, transform_indices = @transform_3, window_bounds = array<i64: 192, 256>}, {pipeline_mode = #tpu.pipeline_mode<synchronous>, transform_indices = @transform_4, window_bounds = array<i64: 1, 256>}, {pipeline_mode = #tpu.pipeline_mode<synchronous>, transform_indices = @transform_5, window_bounds = array<i64: 256, 64>}, {pipeline_mode = #tpu.pipeline_mode<synchronous>, transform_indices = @transform_6, window_bounds = array<i64: 1, 64>}, {pipeline_mode = #tpu.pipeline_mode<synchronous>, transform_indices = @transform_7, window_bounds = array<i64: 64, 128>}, {pipeline_mode = #tpu.pipeline_mode<synchronous>, transform_indices = @transform_8, window_bounds = array<i64: 1, 128>}, {transform_indices = @transform_9, window_bounds = array<i64: 8, 128>}]} {
    %c0 = arith.constant 0 : index
    %c0_0 = arith.constant 0 : index
    %0 = vector.load %arg2[%c0, %c0_0] : memref<4x192xf32, #tpu.memory_space<vmem>>, vector<4x192xf32>
    %c0_1 = arith.constant 0 : index
    %c0_2 = arith.constant 0 : index
    %1 = vector.load %arg3[%c0_1, %c0_2] : memref<1x192xf32, #tpu.memory_space<vmem>>, vector<1x192xf32>
    %c0_3 = arith.constant 0 : index
    %c0_4 = arith.constant 0 : index
    %2 = vector.load %arg4[%c0_3, %c0_4] : memref<192x256xbf16, #tpu.memory_space<vmem>>, vector<192x256xbf16>
    %c0_5 = arith.constant 0 : index
    %c0_6 = arith.constant 0 : index
    %3 = vector.load %arg5[%c0_5, %c0_6] : memref<1x256xf32, #tpu.memory_space<vmem>>, vector<1x256xf32>
    %c0_7 = arith.constant 0 : index
    %c0_8 = arith.constant 0 : index
    %4 = vector.load %arg6[%c0_7, %c0_8] : memref<256x64xbf16, #tpu.memory_space<vmem>>, vector<256x64xbf16>
    %c0_9 = arith.constant 0 : index
    %c0_10 = arith.constant 0 : index
    %5 = vector.load %arg7[%c0_9, %c0_10] : memref<1x64xf32, #tpu.memory_space<vmem>>, vector<1x64xf32>
    %c0_11 = arith.constant 0 : index
    %c0_12 = arith.constant 0 : index
    %6 = vector.load %arg8[%c0_11, %c0_12] : memref<64x128xbf16, #tpu.memory_space<vmem>>, vector<64x128xbf16>
    %c0_13 = arith.constant 0 : index
    %c0_14 = arith.constant 0 : index
    %7 = vector.load %arg9[%c0_13, %c0_14] : memref<1x128xf32, #tpu.memory_space<vmem>>, vector<1x128xf32>
    %c0_15 = arith.constant 0 : index
    %c0_16 = arith.constant 0 : index
    %8 = vector.load %arg1[%c0_15, %c0_16] : memref<8x4xf32, #tpu.memory_space<vmem>>, vector<8x4xf32>
    %9 = vector.extract_strided_slice %8 {offsets = [0, 0], sizes = [8, 1], strides = [1, 1]} : vector<8x4xf32> to vector<8x1xf32>
    %10 = vector.extract_strided_slice %0 {offsets = [0, 0], sizes = [1, 192], strides = [1, 1]} : vector<4x192xf32> to vector<1x192xf32>
    %11 = vector.broadcast %9 : vector<8x1xf32> to vector<8x192xf32>
    %12 = vector.broadcast %10 : vector<1x192xf32> to vector<8x192xf32>
    %13 = arith.mulf %11, %12 : vector<8x192xf32>
    %14 = vector.broadcast %1 : vector<1x192xf32> to vector<8x192xf32>
    %15 = arith.addf %14, %13 : vector<8x192xf32>
    %16 = vector.extract_strided_slice %8 {offsets = [0, 1], sizes = [8, 1], strides = [1, 1]} : vector<8x4xf32> to vector<8x1xf32>
    %17 = vector.extract_strided_slice %0 {offsets = [1, 0], sizes = [1, 192], strides = [1, 1]} : vector<4x192xf32> to vector<1x192xf32>
    %18 = vector.broadcast %16 : vector<8x1xf32> to vector<8x192xf32>
    %19 = vector.broadcast %17 : vector<1x192xf32> to vector<8x192xf32>
    %20 = arith.mulf %18, %19 : vector<8x192xf32>
    %21 = arith.addf %15, %20 : vector<8x192xf32>
    %22 = vector.extract_strided_slice %8 {offsets = [0, 2], sizes = [8, 1], strides = [1, 1]} : vector<8x4xf32> to vector<8x1xf32>
    %23 = vector.extract_strided_slice %0 {offsets = [2, 0], sizes = [1, 192], strides = [1, 1]} : vector<4x192xf32> to vector<1x192xf32>
    %24 = vector.broadcast %22 : vector<8x1xf32> to vector<8x192xf32>
    %25 = vector.broadcast %23 : vector<1x192xf32> to vector<8x192xf32>
    %26 = arith.mulf %24, %25 : vector<8x192xf32>
    %27 = arith.addf %21, %26 : vector<8x192xf32>
    %28 = vector.extract_strided_slice %8 {offsets = [0, 3], sizes = [8, 1], strides = [1, 1]} : vector<8x4xf32> to vector<8x1xf32>
    %29 = vector.extract_strided_slice %0 {offsets = [3, 0], sizes = [1, 192], strides = [1, 1]} : vector<4x192xf32> to vector<1x192xf32>
    %30 = vector.broadcast %28 : vector<8x1xf32> to vector<8x192xf32>
    %31 = vector.broadcast %29 : vector<1x192xf32> to vector<8x192xf32>
    %32 = arith.mulf %30, %31 : vector<8x192xf32>
    %33 = arith.addf %27, %32 : vector<8x192xf32>
    %cst = arith.constant 0.000000e+00 : f32
    %34 = vector.broadcast %cst : f32 to vector<8x192xf32>
    %35 = arith.maximumf %33, %34 : vector<8x192xf32>
    %36 = arith.truncf %35 : vector<8x192xf32> to vector<8x192xbf16>
    %cst_17 = arith.constant dense<0.000000e+00> : vector<8x256xf32>
    %37 = tpu.matmul %36, %2, %cst_17 {dimension_numbers = #tpu.dot_dimension_numbers<[1], [0], [0], [1], [0, 0, 1, 1], [], []>} : vector<8x192xbf16>, vector<192x256xbf16>, vector<8x256xf32> -> vector<8x256xf32>
    %38 = vector.broadcast %3 : vector<1x256xf32> to vector<8x256xf32>
    %39 = arith.addf %37, %38 : vector<8x256xf32>
    %cst_18 = arith.constant 0.000000e+00 : f32
    %40 = vector.broadcast %cst_18 : f32 to vector<8x256xf32>
    %41 = arith.maximumf %39, %40 : vector<8x256xf32>
    %42 = arith.truncf %41 : vector<8x256xf32> to vector<8x256xbf16>
    %cst_19 = arith.constant dense<0.000000e+00> : vector<8x64xf32>
    %43 = tpu.matmul %42, %4, %cst_19 {dimension_numbers = #tpu.dot_dimension_numbers<[1], [0], [0], [1], [0, 0, 1, 1], [], []>} : vector<8x256xbf16>, vector<256x64xbf16>, vector<8x64xf32> -> vector<8x64xf32>
    %44 = vector.broadcast %5 : vector<1x64xf32> to vector<8x64xf32>
    %45 = arith.addf %43, %44 : vector<8x64xf32>
    %cst_20 = arith.constant 0.000000e+00 : f32
    %46 = vector.broadcast %cst_20 : f32 to vector<8x64xf32>
    %47 = arith.maximumf %45, %46 : vector<8x64xf32>
    %48 = arith.truncf %47 : vector<8x64xf32> to vector<8x64xbf16>
    %cst_21 = arith.constant dense<0.000000e+00> : vector<8x128xf32>
    %49 = tpu.matmul %48, %6, %cst_21 {dimension_numbers = #tpu.dot_dimension_numbers<[1], [0], [0], [1], [0, 0, 1, 1], [], []>} : vector<8x64xbf16>, vector<64x128xbf16>, vector<8x128xf32> -> vector<8x128xf32>
    %50 = vector.broadcast %7 : vector<1x128xf32> to vector<8x128xf32>
    %51 = arith.addf %49, %50 : vector<8x128xf32>
    %c0_22 = arith.constant 0 : index
    %c0_23 = arith.constant 0 : index
    %52 = vector.load %arg10[%c0_22, %c0_23] : memref<8x128xf32, #tpu.memory_space<vmem>>, vector<8x128xf32>
    tpu.vector_store %arg10[%c0_22, %c0_23], %51 {strides = array<i32>} : memref<8x128xf32, #tpu.memory_space<vmem>>, vector<8x128xf32>,
    return
  }
  func.func @transform_0(%arg0: i32) -> (i32, i32) {
    %c0_i32 = arith.constant 0 : i32
    %c0_i32_0 = arith.constant 0 : i32
    return %arg0, %c0_i32 : i32, i32
  }
  func.func @transform_1(%arg0: i32) -> (i32, i32) {
    %c0_i32 = arith.constant 0 : i32
    %c0_i32_0 = arith.constant 0 : i32
    %c0_i32_1 = arith.constant 0 : i32
    return %c0_i32, %c0_i32_0 : i32, i32
  }
  func.func @transform_2(%arg0: i32) -> (i32, i32) {
    %c0_i32 = arith.constant 0 : i32
    %c0_i32_0 = arith.constant 0 : i32
    %c0_i32_1 = arith.constant 0 : i32
    return %c0_i32, %c0_i32_0 : i32, i32
  }
  func.func @transform_3(%arg0: i32) -> (i32, i32) {
    %c0_i32 = arith.constant 0 : i32
    %c0_i32_0 = arith.constant 0 : i32
    %c0_i32_1 = arith.constant 0 : i32
    return %c0_i32, %c0_i32_0 : i32, i32
  }
  func.func @transform_4(%arg0: i32) -> (i32, i32) {
    %c0_i32 = arith.constant 0 : i32
    %c0_i32_0 = arith.constant 0 : i32
    %c0_i32_1 = arith.constant 0 : i32
    return %c0_i32, %c0_i32_0 : i32, i32
  }
  func.func @transform_5(%arg0: i32) -> (i32, i32) {
    %c0_i32 = arith.constant 0 : i32
    %c0_i32_0 = arith.constant 0 : i32
    %c0_i32_1 = arith.constant 0 : i32
    return %c0_i32, %c0_i32_0 : i32, i32
  }
  func.func @transform_6(%arg0: i32) -> (i32, i32) {
    %c0_i32 = arith.constant 0 : i32
    %c0_i32_0 = arith.constant 0 : i32
    %c0_i32_1 = arith.constant 0 : i32
    return %c0_i32, %c0_i32_0 : i32, i32
  }
  func.func @transform_7(%arg0: i32) -> (i32, i32) {
    %c0_i32 = arith.constant 0 : i32
    %c0_i32_0 = arith.constant 0 : i32
    %c0_i32_1 = arith.constant 0 : i32
    return %c0_i32, %c0_i32_0 : i32, i32
  }
  func.func @transform_8(%arg0: i32) -> (i32, i32) {
    %c0_i32 = arith.constant 0 : i32
    %c0_i32_0 = arith.constant 0 : i32
    %c0_i32_1 = arith.constant 0 : i32
    return %c0_i32, %c0_i32_0 : i32, i32
  }
  func.func @transform_9(%arg0: i32) -> (i32, i32) {
    %c0_i32 = arith.constant 0 : i32
    %c0_i32_0 = arith.constant 0 : i32
    return %arg0, %c0_i32 : i32, i32
  }
}

</mosaic_0001>

<llo_original>
// kernel: iris_cnn_forward.1
$region0: #{iris_cnn_forward.1}
  #allocation0 [shape = 'u32[]', space=smem, size = 0x4, offset = 0x4, fixed_abs, tag = 'smem constant byte address 0x4 - core index']
  #allocation1 [shape = 'u32[144,128]{1,0:T(1,128)}', space=vmem, size = 0x12000, scoped, tag = 'internal scratch']
  %s0 = inlined_call_operand.vmem [shape: f32[8,4], index: 0, kind: input, shape index: {}]
  %s1 = inlined_call_operand.hbm [shape: f32[4,192], index: 1, kind: input, shape index: {}]
  %s2 = inlined_call_operand.vmem [shape: f32[1,192], index: 2, kind: input, shape index: {}]
  %s3 = inlined_call_operand.vmem [shape: bf16[192,256], index: 3, kind: input, shape index: {}]
  %s4 = inlined_call_operand.hbm [shape: f32[1,256], index: 4, kind: input, shape index: {}]
  %s5 = inlined_call_operand.vmem [shape: bf16[256,64], index: 5, kind: input, shape index: {}]
  %s6 = inlined_call_operand.hbm [shape: f32[1,64], index: 6, kind: input, shape index: {}]
  %s7 = inlined_call_operand.vmem [shape: bf16[64,128], index: 7, kind: input, shape index: {}]
  %s8 = inlined_call_operand.vmem [shape: f32[1,128], index: 8, kind: input, shape index: {}]
  %s9 = inlined_call_operand.vmem [shape: f32[8,128], index: 9, kind: output, shape index: {}]
  %s10 = sld [smem:[#allocation0]]
  $region58: #{iris_cnn_forward.1} parent=0
    _
  %s12 = ssub.s32 1, %s10
  %s13 = scalar_select 0, %s12, %s10
  $region1: #{iris_cnn_forward.1} parent=0
    #allocation2 [shape = 'u8[4096]{0}', space=vmem, size = 0x1000, scoped, tag = 'input window, operand 1, single buffered']
    #allocation3 [shape = 's32[1]{0}', space=sflag, size = 0x4, scoped, tag = 'scoped memory for iris_cnn_forward.1']
    #allocation4 [shape = 'u8[1024]{0}', space=vmem, size = 0x400, scoped, tag = 'input window, operand 4, single buffered']
    #allocation5 [shape = 's32[1]{0}', space=sflag, size = 0x4, scoped, tag = 'scoped memory for iris_cnn_forward.1']
    #allocation6 [shape = 'u8[512]{0}', space=vmem, size = 0x400, scoped, tag = 'input window, operand 6, single buffered']
    %14 = vsyncpa [#allocation3], 0
    %15 = vsyncpa [#allocation5], 0
    // Predicated region
    $region2: #{iris_cnn_forward.1} parent=1 // pred_check
      _
    $region3: #{iris_cnn_forward.1} parent=1 // pred_check_branch
      %17 = sbr.rel (0) target = $region5
    $region4: #{iris_cnn_forward.1} parent=1 // pred_region
      _
    $region5: #{iris_cnn_forward.1} parent=1 // pred_fallthru
      _
    // Predicated region
    $region6: #{iris_cnn_forward.1} parent=1 // pred_check
      _
    $region7: #{iris_cnn_forward.1} parent=1 // pred_check_branch
      %19 = sbr.rel (0) target = $region9
    $region8: #{iris_cnn_forward.1} parent=1 // pred_region
      %s21 = ssub.s32 128, 128
      %22 = vsyncadd [#allocation3], %s21
      %s24 = sshll.u32 [#allocation2], 4
      %s25 = int_to_ptr.vmem [resolvable:$true] %s24
      %27 = dma.hbm_to_vmem [thread:$0]  %s1, 128, %s25, [#allocation3]
    $region9: #{iris_cnn_forward.1} parent=1 // pred_fallthru
      _
    // Predicated region
    $region10: #{iris_cnn_forward.1} parent=1 // pred_check
      _
    $region11: #{iris_cnn_forward.1} parent=1 // pred_check_branch
      %29 = sbr.rel (0) target = $region13
    $region12: #{iris_cnn_forward.1} parent=1 // pred_region
      _
    $region13: #{iris_cnn_forward.1} parent=1 // pred_fallthru
      _
    // Predicated region
    $region14: #{iris_cnn_forward.1} parent=1 // pred_check
      _
    $region15: #{iris_cnn_forward.1} parent=1 // pred_check_branch
      %31 = sbr.rel (0) target = $region17
    $region16: #{iris_cnn_forward.1} parent=1 // pred_region
      _
    $region17: #{iris_cnn_forward.1} parent=1 // pred_fallthru
      _
    // Predicated region
    $region18: #{iris_cnn_forward.1} parent=1 // pred_check
      _
    $region19: #{iris_cnn_forward.1} parent=1 // pred_check_branch
      %33 = sbr.rel (0) target = $region21
    $region20: #{iris_cnn_forward.1} parent=1 // pred_region
      %s35 = ssub.s32 32, 32
      %36 = vsyncadd [#allocation5], %s35
      %s38 = sshll.u32 [#allocation4], 4
      %s39 = int_to_ptr.vmem [resolvable:$true] %s38
      %41 = dma.hbm_to_vmem [thread:$0]  %s4, 32, %s39, [#allocation5]
    $region21: #{iris_cnn_forward.1} parent=1 // pred_fallthru
      _
    // Predicated region
    $region22: #{iris_cnn_forward.1} parent=1 // pred_check
      _
    $region23: #{iris_cnn_forward.1} parent=1 // pred_check_branch
      %43 = sbr.rel (0) target = $region25
    $region24: #{iris_cnn_forward.1} parent=1 // pred_region
      _
    $region25: #{iris_cnn_forward.1} parent=1 // pred_fallthru
      _
    // Predicated region
    $region26: #{iris_cnn_forward.1} parent=1 // pred_check
      _
    $region27: #{iris_cnn_forward.1} parent=1 // pred_check_branch
      %45 = sbr.rel (0) target = $region29
    $region28: #{iris_cnn_forward.1} parent=1 // pred_region
      %s47 = ssub.s32 16, 16
      %48 = vsyncadd [#allocation5], %s47
      %s50 = sshll.u32 [#allocation6], 4
      %s51 = int_to_ptr.vmem [resolvable:$true] %s50
      %53 = dma.hbm_to_vmem [thread:$0]  %s6, 16, %s51, [#allocation5]
    $region29: #{iris_cnn_forward.1} parent=1 // pred_fallthru
      _
    // Predicated region
    $region30: #{iris_cnn_forward.1} parent=1 // pred_check
      _
    $region31: #{iris_cnn_forward.1} parent=1 // pred_check_branch
      %55 = sbr.rel (0) target = $region33
    $region32: #{iris_cnn_forward.1} parent=1 // pred_region
      _
    $region33: #{iris_cnn_forward.1} parent=1 // pred_fallthru
      _
    // Predicated region
    $region34: #{iris_cnn_forward.1} parent=1 // pred_check
      _
    $region35: #{iris_cnn_forward.1} parent=1 // pred_check_branch
      %57 = sbr.rel (0) target = $region37
    $region36: #{iris_cnn_forward.1} parent=1 // pred_region
      _
    $region37: #{iris_cnn_forward.1} parent=1 // pred_fallthru
      _
    // Predicated region
    $region38: #{iris_cnn_forward.1} parent=1 // pred_check
      _
    $region39: #{iris_cnn_forward.1} parent=1 // pred_check_branch
      %59 = sbr.rel (0) target = $region41
    $region40: #{iris_cnn_forward.1} parent=1 // pred_region
      %60 = dma.done [#allocation3], 128
    $region41: #{iris_cnn_forward.1} parent=1 // pred_fallthru
      _
    // Predicated region
    $region42: #{iris_cnn_forward.1} parent=1 // pred_check
      _
    $region43: #{iris_cnn_forward.1} parent=1 // pred_check_branch
      %62 = sbr.rel (0) target = $region45
    $region44: #{iris_cnn_forward.1} parent=1 // pred_region
      %63 = dma.done [#allocation5], 32
    $region45: #{iris_cnn_forward.1} parent=1 // pred_fallthru
      _
    // Predicated region
    $region46: #{iris_cnn_forward.1} parent=1 // pred_check
      _
    $region47: #{iris_cnn_forward.1} parent=1 // pred_check_branch
      %65 = sbr.rel (0) target = $region49
    $region48: #{iris_cnn_forward.1} parent=1 // pred_region
      %66 = dma.done [#allocation5], 16
    $region49: #{iris_cnn_forward.1} parent=1 // pred_fallthru
      _
    %v68 = vld [vmem:[#allocation2] sm:$0xff]
    %v69 = vld [vmem:[%s2] sm:$0x3]
    %v70 = vld [vmem:[%s3] sm:$0xff]
    %v71 = vld [vmem:[%s3 + $0x8] sm:$0xff]
    %v72 = vld [vmem:[%s3 + $0x10] sm:$0xff]
    %v73 = vld [vmem:[%s3 + $0x18] sm:$0xff]
    %v74 = vld [vmem:[%s3 + $0x20] sm:$0xff]
    %v75 = vld [vmem:[%s3 + $0x28] sm:$0xff]
    %v76 = vld [vmem:[%s3 + $0x30] sm:$0xff]
    %v77 = vld [vmem:[%s3 + $0x38] sm:$0xff]
    %v78 = vld [vmem:[%s3 + $0x40] sm:$0xff]
    %v79 = vld [vmem:[%s3 + $0x48] sm:$0xff]
    %v80 = vld [vmem:[%s3 + $0x50] sm:$0xff]
    %v81 = vld [vmem:[%s3 + $0x58] sm:$0xff]
    %v82 = vld [vmem:[%s3 + $0x60] sm:$0xff]
    %v83 = vld [vmem:[%s3 + $0x68] sm:$0xff]
    %v84 = vld [vmem:[%s3 + $0x70] sm:$0xff]
    %v85 = vld [vmem:[%s3 + $0x78] sm:$0xff]
    %v86 = vld [vmem:[%s3 + $0x80] sm:$0xff]
    %v87 = vld [vmem:[%s3 + $0x88] sm:$0xff]
    %v88 = vld [vmem:[%s3 + $0x90] sm:$0xff]
    %v89 = vld [vmem:[%s3 + $0x98] sm:$0xff]
    %v90 = vld [vmem:[%s3 + $0xa0] sm:$0xff]
    %v91 = vld [vmem:[%s3 + $0xa8] sm:$0xff]
    %v92 = vld [vmem:[%s3 + $0xb0] sm:$0xff]
    %v93 = vld [vmem:[%s3 + $0xb8] sm:$0xff]
    %v94 = vld [vmem:[#allocation4] sm:$0x3]
    %v95 = vld [vmem:[%s5] sm:$0xf]
    %v96 = vld [vmem:[%s5 + $0x4] sm:$0xf]
    %v97 = vld [vmem:[%s5 + $0x8] sm:$0xf]
    %v98 = vld [vmem:[%s5 + $0xc] sm:$0xf]
    %v99 = vld [vmem:[%s5 + $0x10] sm:$0xf]
    %v100 = vld [vmem:[%s5 + $0x14] sm:$0xf]
    %v101 = vld [vmem:[%s5 + $0x18] sm:$0xf]
    %v102 = vld [vmem:[%s5 + $0x1c] sm:$0xf]
    %v103 = vld [vmem:[%s5 + $0x20] sm:$0xf]
    %v104 = vld [vmem:[%s5 + $0x24] sm:$0xf]
    %v105 = vld [vmem:[%s5 + $0x28] sm:$0xf]
    %v106 = vld [vmem:[%s5 + $0x2c] sm:$0xf]
    %v107 = vld [vmem:[%s5 + $0x30] sm:$0xf]
    %v108 = vld [vmem:[%s5 + $0x34] sm:$0xf]
    %v109 = vld [vmem:[%s5 + $0x38] sm:$0xf]
    %v110 = vld [vmem:[%s5 + $0x3c] sm:$0xf]
    %v111 = vld [vmem:[%s5 + $0x40] sm:$0xf]
    %v112 = vld [vmem:[%s5 + $0x44] sm:$0xf]
    %v113 = vld [vmem:[%s5 + $0x48] sm:$0xf]
    %v114 = vld [vmem:[%s5 + $0x4c] sm:$0xf]
    %v115 = vld [vmem:[%s5 + $0x50] sm:$0xf]
    %v116 = vld [vmem:[%s5 + $0x54] sm:$0xf]
    %v117 = vld [vmem:[%s5 + $0x58] sm:$0xf]
    %v118 = vld [vmem:[%s5 + $0x5c] sm:$0xf]
    %v119 = vld [vmem:[%s5 + $0x60] sm:$0xf]
    %v120 = vld [vmem:[%s5 + $0x64] sm:$0xf]
    %v121 = vld [vmem:[%s5 + $0x68] sm:$0xf]
    %v122 = vld [vmem:[%s5 + $0x6c] sm:$0xf]
    %v123 = vld [vmem:[%s5 + $0x70] sm:$0xf]
    %v124 = vld [vmem:[%s5 + $0x74] sm:$0xf]
    %v125 = vld [vmem:[%s5 + $0x78] sm:$0xf]
    %v126 = vld [vmem:[%s5 + $0x7c] sm:$0xf]
    %v127 = vld [vmem:[#allocation6] sm:$0x1]
    %v128 = vld [vmem:[%s7] sm:$0xf]
    %v129 = vld [vmem:[%s7 + $0x4] sm:$0xf]
    %v130 = vld [vmem:[%s7 + $0x8] sm:$0xf]
    %v131 = vld [vmem:[%s7 + $0xc] sm:$0xf]
    %v132 = vld [vmem:[%s7 + $0x10] sm:$0xf]
    %v133 = vld [vmem:[%s7 + $0x14] sm:$0xf]
    %v134 = vld [vmem:[%s7 + $0x18] sm:$0xf]
    %v135 = vld [vmem:[%s7 + $0x1c] sm:$0xf]
    %v136 = vld [vmem:[%s8] sm:$0x1]
    %v137 = vld [vmem:[%s0] sm:$0xff]
    %139 = vset.pattern.permute.xlu0 0
    %140 = vperm.xlu0 %139, %v137
    %v141 = vpop.permute.xlu0 %140
    %v144 = vlaneseq
    %v145 = vshrl.u32 %v144, 7
    %v146 = vsub.s32 0, %v145
    %v147 = vrot.slane %v68, %v146
    %v148 = vlaneseq
    %v149 = vshrl.u32 %v148, 7
    %v150 = vsub.s32 4, %v149
    %v151 = vrot.slane %v68, %v150
    %v154 = vlaneseq
    %v155 = vshrl.u32 %v154, 7
    %v156 = vsub.s32 0, %v155
    %v157 = vrot.slane %v147, %v156
    %v158 = vlaneseq
    %v159 = vshrl.u32 %v158, 7
    %v160 = vsub.s32 0, %v159
    %v161 = vrot.slane %v151, %v160
    %v162 = vmul.f32 %v141, %v157
    %v163 = vmul.f32 %v141, %v161
    %v165 = vlaneseq
    %v166 = vshrl.u32 %v165, 7
    %v167 = vsub.s32 0, %v166
    %v168 = vrot.slane %v69, %v167
    %v169 = vlaneseq
    %v170 = vshrl.u32 %v169, 7
    %v171 = vsub.s32 1, %v170
    %v172 = vrot.slane %v69, %v171
    %v175 = vadd.f32 %v168, %v162
    %v176 = vadd.f32 %v172, %v163
    %177 = vset.pattern.permute.xlu0 1
    %178 = vperm.xlu0 %177, %v137
    %v179 = vpop.permute.xlu0 %178
    %v181 = vlaneseq
    %v182 = vshrl.u32 %v181, 7
    %v183 = vsub.s32 1, %v182
    %v184 = vrot.slane %v68, %v183
    %v185 = vlaneseq
    %v186 = vshrl.u32 %v185, 7
    %v187 = vsub.s32 5, %v186
    %v188 = vrot.slane %v68, %v187
    %v191 = vlaneseq
    %v192 = vshrl.u32 %v191, 7
    %v193 = vsub.s32 1, %v192
    %v194 = vrot.slane %v184, %v193
    %v195 = vlaneseq
    %v196 = vshrl.u32 %v195, 7
    %v197 = vsub.s32 1, %v196
    %v198 = vrot.slane %v188, %v197
    %v199 = vmul.f32 %v179, %v194
    %v200 = vmul.f32 %v179, %v198
    %v201 = vadd.f32 %v175, %v199
    %v202 = vadd.f32 %v176, %v200
    %203 = vset.pattern.permute.xlu0 2
    %204 = vperm.xlu0 %203, %v137
    %v205 = vpop.permute.xlu0 %204
    %v207 = vlaneseq
    %v208 = vshrl.u32 %v207, 7
    %v209 = vsub.s32 2, %v208
    %v210 = vrot.slane %v68, %v209
    %v211 = vlaneseq
    %v212 = vshrl.u32 %v211, 7
    %v213 = vsub.s32 6, %v212
    %v214 = vrot.slane %v68, %v213
    %v217 = vlaneseq
    %v218 = vshrl.u32 %v217, 7
    %v219 = vsub.s32 2, %v218
    %v220 = vrot.slane %v210, %v219
    %v221 = vlaneseq
    %v222 = vshrl.u32 %v221, 7
    %v223 = vsub.s32 2, %v222
    %v224 = vrot.slane %v214, %v223
    %v225 = vmul.f32 %v205, %v220
    %v226 = vmul.f32 %v205, %v224
    %v227 = vadd.f32 %v201, %v225
    %v228 = vadd.f32 %v202, %v226
    %229 = vset.pattern.permute.xlu0 3
    %230 = vperm.xlu0 %229, %v137
    %v231 = vpop.permute.xlu0 %230
    %v233 = vlaneseq
    %v234 = vshrl.u32 %v233, 7
    %v235 = vsub.s32 3, %v234
    %v236 = vrot.slane %v68, %v235
    %v237 = vlaneseq
    %v238 = vshrl.u32 %v237, 7
    %v239 = vsub.s32 7, %v238
    %v240 = vrot.slane %v68, %v239
    %v243 = vlaneseq
    %v244 = vshrl.u32 %v243, 7
    %v245 = vsub.s32 3, %v244
    %v246 = vrot.slane %v236, %v245
    %v247 = vlaneseq
    %v248 = vshrl.u32 %v247, 7
    %v249 = vsub.s32 3, %v248
    %v250 = vrot.slane %v240, %v249
    %v251 = vmul.f32 %v231, %v246
    %v252 = vmul.f32 %v231, %v250
    %v253 = vadd.f32 %v227, %v251
    %v254 = vadd.f32 %v228, %v252
    %v255 = vmax.f32 %v253, 0.0
    %v256 = vmax.f32 %v254, 0.0
    %v257 = vpack.c.bf16 %v255, %v255
    %v258 = vpack.c.bf16 %v256, %v256
    %v260 = vlaneseq
    %v261 = vshrl.u32 %v260, 7
    %v262 = vsub.s32 0, %v261
    %v263 = vrot.slane %v94, %v262
    %v264 = vlaneseq
    %v265 = vshrl.u32 %v264, 7
    %v266 = vsub.s32 1, %v265
    %v267 = vrot.slane %v94, %v266
    %v294 = vunpack.c.l.b16 %v70
    %v295 = vunpack.c.h.b16 %v70
    %v296 = vunpack.c.l.b16 %v71
    %v297 = vunpack.c.h.b16 %v71
    %v298 = vunpack.c.l.b16 %v72
    %v299 = vunpack.c.h.b16 %v72
    %v300 = vunpack.c.l.b16 %v73
    %v301 = vunpack.c.h.b16 %v73
    %v302 = vunpack.c.l.b16 %v74
    %v303 = vunpack.c.h.b16 %v74
    %v304 = vunpack.c.l.b16 %v75
    %v305 = vunpack.c.h.b16 %v75
    %v306 = vunpack.c.l.b16 %v76
    %v307 = vunpack.c.h.b16 %v76
    %v308 = vunpack.c.l.b16 %v77
    %v309 = vunpack.c.h.b16 %v77
    %v310 = vunpack.c.l.b16 %v78
    %v311 = vunpack.c.h.b16 %v78
    %v312 = vunpack.c.l.b16 %v79
    %v313 = vunpack.c.h.b16 %v79
    %v314 = vunpack.c.l.b16 %v80
    %v315 = vunpack.c.h.b16 %v80
    %v316 = vunpack.c.l.b16 %v81
    %v317 = vunpack.c.h.b16 %v81
    %v318 = vunpack.c.l.b16 %v82
    %v319 = vunpack.c.h.b16 %v82
    %v320 = vunpack.c.l.b16 %v83
    %v321 = vunpack.c.h.b16 %v83
    %v322 = vunpack.c.l.b16 %v84
    %v323 = vunpack.c.h.b16 %v84
    %v324 = vunpack.c.l.b16 %v85
    %v325 = vunpack.c.h.b16 %v85
    %v326 = vunpack.c.l.b16 %v86
    %v327 = vunpack.c.h.b16 %v86
    %v328 = vunpack.c.l.b16 %v87
    %v329 = vunpack.c.h.b16 %v87
    %v330 = vunpack.c.l.b16 %v88
    %v331 = vunpack.c.h.b16 %v88
    %v332 = vunpack.c.l.b16 %v89
    %v333 = vunpack.c.h.b16 %v89
    %v334 = vunpack.c.l.b16 %v90
    %v335 = vunpack.c.h.b16 %v90
    %v336 = vunpack.c.l.b16 %v91
    %v337 = vunpack.c.h.b16 %v91
    %v338 = vunpack.c.l.b16 %v92
    %v339 = vunpack.c.h.b16 %v92
    %v340 = vunpack.c.l.b16 %v93
    %v341 = vunpack.c.h.b16 %v93
    %v342 = vpack.c.b16 %v296, %v294
    %v343 = vpack.c.b16 %v297, %v295
    %v344 = vpack.c.b16 %v300, %v298
    %v345 = vpack.c.b16 %v301, %v299
    %v346 = vpack.c.b16 %v304, %v302
    %v347 = vpack.c.b16 %v305, %v303
    %v348 = vpack.c.b16 %v308, %v306
    %v349 = vpack.c.b16 %v309, %v307
    %v350 = vpack.c.b16 %v312, %v310
    %v351 = vpack.c.b16 %v313, %v311
    %v352 = vpack.c.b16 %v316, %v314
    %v353 = vpack.c.b16 %v317, %v315
    %v354 = vpack.c.b16 %v320, %v318
    %v355 = vpack.c.b16 %v321, %v319
    %v356 = vpack.c.b16 %v324, %v322
    %v357 = vpack.c.b16 %v325, %v323
    %v358 = vpack.c.b16 %v328, %v326
    %v359 = vpack.c.b16 %v329, %v327
    %v360 = vpack.c.b16 %v332, %v330
    %v361 = vpack.c.b16 %v333, %v331
    %v362 = vpack.c.b16 %v336, %v334
    %v363 = vpack.c.b16 %v337, %v335
    %v364 = vpack.c.b16 %v340, %v338
    %v365 = vpack.c.b16 %v341, %v339
    %vm390 = vcmask 523264
    %v392 = vsel %vm390, %v258, 0
    %394 = vmatprep.subr.bf16.mxu0 %v343
    %395 = vmatpush1.bf16.msra.mxu0 %v342
    %396 = vmatprep.subr.bf16.mxu0 %v345
    %397 = vmatpush1.bf16.msra.mxu0 %v344
    %398 = vmatprep.subr.bf16.mxu0 %v347
    %399 = vmatpush1.bf16.msra.mxu0 %v346
    %400 = vmatprep.subr.bf16.mxu0 %v349
    %401 = vmatpush1.bf16.msra.mxu0 %v348
    %402 = vmatprep.subr.bf16.mxu0 %v351
    %403 = vmatpush1.bf16.msra.mxu0 %v350
    %404 = vmatprep.subr.bf16.mxu0 %v353
    %405 = vmatpush1.bf16.msra.mxu0 %v352
    %406 = vmatprep.subr.bf16.mxu0 %v355
    %407 = vmatpush1.bf16.msra.mxu0 %v354
    %408 = vmatprep.subr.bf16.mxu0 %v357
    %409 = vmatpush1.bf16.msra.mxu0 %v356
    %410 = vmatprep.subr.bf16.mxu0 %v359
    %411 = vmatpush1.bf16.msra.mxu0 %v358
    %412 = vmatprep.subr.bf16.mxu0 %v361
    %413 = vmatpush1.bf16.msra.mxu0 %v360
    %414 = vmatprep.subr.bf16.mxu0 %v363
    %415 = vmatpush1.bf16.msra.mxu0 %v362
    %416 = vmatprep.subr.bf16.mxu0 %v365
    %417 = vmatpush1.bf16.msra.mxu0 %v364
    %418 = vmatprep.subr.bf16.mxu0 0
    %419 = vmatpush1.bf16.msra.mxu0 0
    %420 = vmatprep.subr.bf16.mxu0 0
    %421 = vmatpush1.bf16.msra.mxu0 0
    %422 = vmatprep.subr.bf16.mxu0 0
    %423 = vmatpush1.bf16.msra.mxu0 0
    %424 = vmatprep.subr.bf16.mxu0 0
    %425 = vmatpush1.bf16.msra.mxu0 0
    %426 = vmatprep.mubr.bf16.mxu0 %v392
    %427 = vmatmul.mubr.bf16.gmra.mrb[0].mxu0 %v257
    %v428 = vpop.f32.mrb[0].mxu0
    %v429 = vadd.f32 %v263, %v428
    %v430 = vpop.f32.mrb[0].mxu0
    %v431 = vadd.f32 %v267, %v430
    %v432 = vpop.f32.mrb[0].mxu0
    %v433 = vpop.f32.mrb[0].mxu0
    %434 = vdwg.mxu0
    %v435 = vmax.f32 %v429, 0.0
    %v436 = vmax.f32 %v431, 0.0
    %v437 = vpack.c.bf16 %v435, %v435
    %v438 = vpack.c.bf16 %v436, %v436
    %v440 = vlaneseq
    %v441 = vshrl.u32 %v440, 7
    %v442 = vsub.s32 0, %v441
    %v443 = vrot.slane %v127, %v442
    %v477 = vunpack.c.l.b16 %v95
    %v478 = vunpack.c.l.b16 %v96
    %v479 = vunpack.c.l.b16 %v97
    %v480 = vunpack.c.l.b16 %v98
    %v481 = vunpack.c.l.b16 %v99
    %v482 = vunpack.c.l.b16 %v100
    %v483 = vunpack.c.l.b16 %v101
    %v484 = vunpack.c.l.b16 %v102
    %v485 = vunpack.c.l.b16 %v103
    %v486 = vunpack.c.l.b16 %v104
    %v487 = vunpack.c.l.b16 %v105
    %v488 = vunpack.c.l.b16 %v106
    %v489 = vunpack.c.l.b16 %v107
    %v490 = vunpack.c.l.b16 %v108
    %v491 = vunpack.c.l.b16 %v109
    %v492 = vunpack.c.l.b16 %v110
    %v493 = vunpack.c.l.b16 %v111
    %v494 = vunpack.c.l.b16 %v112
    %v495 = vunpack.c.l.b16 %v113
    %v496 = vunpack.c.l.b16 %v114
    %v497 = vunpack.c.l.b16 %v115
    %v498 = vunpack.c.l.b16 %v116
    %v499 = vunpack.c.l.b16 %v117
    %v500 = vunpack.c.l.b16 %v118
    %v501 = vunpack.c.l.b16 %v119
    %v502 = vunpack.c.l.b16 %v120
    %v503 = vunpack.c.l.b16 %v121
    %v504 = vunpack.c.l.b16 %v122
    %v505 = vunpack.c.l.b16 %v123
    %v506 = vunpack.c.l.b16 %v124
    %v507 = vunpack.c.l.b16 %v125
    %v508 = vunpack.c.l.b16 %v126
    %v509 = vpack.c.b16 %v478, %v477
    %v510 = vpack.c.b16 %v480, %v479
    %v511 = vpack.c.b16 %v482, %v481
    %v512 = vpack.c.b16 %v484, %v483
    %v513 = vpack.c.b16 %v486, %v485
    %v514 = vpack.c.b16 %v488, %v487
    %v515 = vpack.c.b16 %v490, %v489
    %v516 = vpack.c.b16 %v492, %v491
    %v517 = vpack.c.b16 %v494, %v493
    %v518 = vpack.c.b16 %v496, %v495
    %v519 = vpack.c.b16 %v498, %v497
    %v520 = vpack.c.b16 %v500, %v499
    %v521 = vpack.c.b16 %v502, %v501
    %v522 = vpack.c.b16 %v504, %v503
    %v523 = vpack.c.b16 %v506, %v505
    %v524 = vpack.c.b16 %v508, %v507
    %541 = vmatprep.subr.bf16.mxu0 0
    %542 = vmatpush1.bf16.msra.mxu0 %v509
    %543 = vmatprep.subr.bf16.mxu0 0
    %544 = vmatpush1.bf16.msra.mxu0 %v510
    %545 = vmatprep.subr.bf16.mxu0 0
    %546 = vmatpush1.bf16.msra.mxu0 %v511
    %547 = vmatprep.subr.bf16.mxu0 0
    %548 = vmatpush1.bf16.msra.mxu0 %v512
    %549 = vmatprep.subr.bf16.mxu0 0
    %550 = vmatpush1.bf16.msra.mxu0 %v513
    %551 = vmatprep.subr.bf16.mxu0 0
    %552 = vmatpush1.bf16.msra.mxu0 %v514
    %553 = vmatprep.subr.bf16.mxu0 0
    %554 = vmatpush1.bf16.msra.mxu0 %v515
    %555 = vmatprep.subr.bf16.mxu0 0
    %556 = vmatpush1.bf16.msra.mxu0 %v516
    %557 = vmatprep.subr.bf16.mxu0 0
    %558 = vmatpush1.bf16.msra.mxu0 %v517
    %559 = vmatprep.subr.bf16.mxu0 0
    %560 = vmatpush1.bf16.msra.mxu0 %v518
    %561 = vmatprep.subr.bf16.mxu0 0
    %562 = vmatpush1.bf16.msra.mxu0 %v519
    %563 = vmatprep.subr.bf16.mxu0 0
    %564 = vmatpush1.bf16.msra.mxu0 %v520
    %565 = vmatprep.subr.bf16.mxu0 0
    %566 = vmatpush1.bf16.msra.mxu0 %v521
    %567 = vmatprep.subr.bf16.mxu0 0
    %568 = vmatpush1.bf16.msra.mxu0 %v522
    %569 = vmatprep.subr.bf16.mxu0 0
    %570 = vmatpush1.bf16.msra.mxu0 %v523
    %571 = vmatprep.subr.bf16.mxu0 0
    %572 = vmatpush1.bf16.msra.mxu0 %v524
    %573 = vmatprep.mubr.bf16.mxu0 %v438
    %574 = vmatmul.mubr.bf16.gmra.mrb[0].mxu0 %v437
    %v575 = vpop.f32.mrb[0].mxu0
    %v576 = vadd.f32 %v443, %v575
    %v577 = vpop.f32.mrb[0].mxu0
    %v578 = vpop.f32.mrb[0].mxu0
    %v579 = vpop.f32.mrb[0].mxu0
    %580 = vdwg.mxu0
    %v581 = vmax.f32 %v576, 0.0
    %v582 = vpack.c.bf16 %v581, %v581
    %v584 = vlaneseq
    %v585 = vshrl.u32 %v584, 7
    %v586 = vsub.s32 0, %v585
    %v587 = vrot.slane %v136, %v586
    %v597 = vunpack.c.l.b16 %v128
    %v598 = vunpack.c.l.b16 %v129
    %v599 = vunpack.c.l.b16 %v130
    %v600 = vunpack.c.l.b16 %v131
    %v601 = vunpack.c.l.b16 %v132
    %v602 = vunpack.c.l.b16 %v133
    %v603 = vunpack.c.l.b16 %v134
    %v604 = vunpack.c.l.b16 %v135
    %v605 = vpack.c.b16 %v598, %v597
    %v606 = vpack.c.b16 %v600, %v599
    %v607 = vpack.c.b16 %v602, %v601
    %v608 = vpack.c.b16 %v604, %v603
    %v614 = vsel %vm390, %v582, 0
    %616 = vmatprep.subr.bf16.mxu0 0
    %617 = vmatpush1.bf16.msra.mxu0 %v605
    %618 = vmatprep.subr.bf16.mxu0 0
    %619 = vmatpush1.bf16.msra.mxu0 %v606
    %620 = vmatprep.subr.bf16.mxu0 0
    %621 = vmatpush1.bf16.msra.mxu0 %v607
    %622 = vmatprep.subr.bf16.mxu0 0
    %623 = vmatpush1.bf16.msra.mxu0 %v608
    %624 = vmatprep.subr.bf16.mxu0 0
    %625 = vmatpush1.bf16.msra.mxu0 0
    %626 = vmatprep.subr.bf16.mxu0 0
    %627 = vmatpush1.bf16.msra.mxu0 0
    %628 = vmatprep.subr.bf16.mxu0 0
    %629 = vmatpush1.bf16.msra.mxu0 0
    %630 = vmatprep.subr.bf16.mxu0 0
    %631 = vmatpush1.bf16.msra.mxu0 0
    %632 = vmatprep.subr.bf16.mxu0 0
    %633 = vmatpush1.bf16.msra.mxu0 0
    %634 = vmatprep.subr.bf16.mxu0 0
    %635 = vmatpush1.bf16.msra.mxu0 0
    %636 = vmatprep.subr.bf16.mxu0 0
    %637 = vmatpush1.bf16.msra.mxu0 0
    %638 = vmatprep.subr.bf16.mxu0 0
    %639 = vmatpush1.bf16.msra.mxu0 0
    %640 = vmatprep.subr.bf16.mxu0 0
    %641 = vmatpush1.bf16.msra.mxu0 0
    %642 = vmatprep.subr.bf16.mxu0 0
    %643 = vmatpush1.bf16.msra.mxu0 0
    %644 = vmatprep.subr.bf16.mxu0 0
    %645 = vmatpush1.bf16.msra.mxu0 0
    %646 = vmatprep.subr.bf16.mxu0 0
    %647 = vmatpush1.bf16.msra.mxu0 0
    %648 = vmatprep.mubr.bf16.mxu0 0
    %649 = vmatmul.mubr.bf16.gmra.mrb[0].mxu0 %v614
    %v650 = vpop.f32.mrb[0].mxu0
    %v651 = vadd.f32 %v587, %v650
    %v652 = vpop.f32.mrb[0].mxu0
    %v653 = vpop.f32.mrb[0].mxu0
    %v654 = vpop.f32.mrb[0].mxu0
    %655 = vdwg.mxu0
    %656 = vst [vmem:[%s9] sm:$0xff] %v651
    // Predicated region
    $region50: #{iris_cnn_forward.1} parent=1 // pred_check
      _
    $region51: #{iris_cnn_forward.1} parent=1 // pred_check_branch
      %658 = sbr.rel (0) target = $region53
    $region52: #{iris_cnn_forward.1} parent=1 // pred_region
      _
    $region53: #{iris_cnn_forward.1} parent=1 // pred_fallthru
      _
    // Predicated region
    $region54: #{iris_cnn_forward.1} parent=1 // pred_check
      _
    $region55: #{iris_cnn_forward.1} parent=1 // pred_check_branch
      %660 = sbr.rel (0) target = $region57
    $region56: #{iris_cnn_forward.1} parent=1 // pred_region
      _
    $region57: #{iris_cnn_forward.1} parent=1 // pred_fallthru
      _
    %661 = vsyncpa [#allocation3], 1
    %662 = vsyncpa [#allocation5], 1

</llo_original>
